<compile_context>
chip_gen: v7x
topology: tpu7x:2x2x1
jax: 0.10.0
libtpu: 0.0.40
codegen_flags: <defaults>
</compile_context>

<pallas_src>
import math
import functools

import numpy as np
import jax
import jax.numpy as jnp
from jax.experimental import pallas as pl
from jax.experimental.pallas import tpu as pltpu


# ----------------------------- parameter setup (host-side numpy) -----------------------------

def get_gaussian_kernel_2d(ksize=0, sigma=0):
    # Mirrors the PyTorch reference exactly, in numpy.
    x_grid = np.tile(np.arange(ksize), ksize).reshape(ksize, ksize)
    y_grid = x_grid.T
    xy_grid = np.stack([x_grid, y_grid], axis=-1).astype(np.float32)
    mean = (ksize - 1) / 2.0
    variance = sigma ** 2.0
    gaussian_kernel = (1.0 / (2.0 * math.pi * variance + 1e-16)) * np.exp(
        -np.sum((xy_grid - mean) ** 2.0, axis=-1) / (2 * variance + 1e-16)
    )
    return gaussian_kernel / np.sum(gaussian_kernel)


def make_svls_params(ksize=3, sigma=1.0):
    gkernel = get_gaussian_kernel_2d(ksize=ksize, sigma=sigma).astype(np.float32)
    # Faithful to the module: neighbors_sum uses gkernel[1, 1] (== center for ksize=3).
    neighbors_sum = 1.0 - gkernel[1, 1] + 1e-16
    gkernel[ksize // 2, ksize // 2] = neighbors_sum
    svls_kernel = gkernel / neighbors_sum          # (ksize, ksize)
    ksum = float(svls_kernel.sum())                # scalar divisor used in forward
    return svls_kernel, ksum


def _group_scaled_weights(svls_kernel, ksum):
    """Fold /ksum into the tap weights and group identical weights (Gaussian
    symmetry) so the kernel does len(groups) multiplies instead of K*K."""
    K = svls_kernel.shape[0]
    scaled = (svls_kernel / ksum).astype(np.float32)
    groups = {}
    for i in range(K):
        for j in range(K):
            groups.setdefault(float(scaled[i, j]), []).append((i, j))
    return tuple((w, tuple(taps)) for w, taps in groups.items())


# ----------------------------- Pallas kernel (hot path) -----------------------------

def _svls_conv_kernel(x_ref, o_ref, xp_ref, *, weight_groups, H, W, pad):
    # x_ref / o_ref : (nc_block, H, W)        -- W on the 128-lane axis, H on sublanes.
    # xp_ref        : (nc_block, H+2p, W+2p)  -- f32 VMEM scratch (replicate-padded tile).
    x = x_ref[...].astype(jnp.float32)

    # --- build the replicate ('edge') halo entirely in VMEM ---
    xp_ref[:, pad:pad + H, pad:pad + W] = x
    for r in range(pad):                                   # top / bottom rows (sublane dim)
        xp_ref[:, r:r + 1, pad:pad + W] = x[:, 0:1, :]
        xp_ref[:, pad + H + r:pad + H + r + 1, pad:pad + W] = x[:, H - 1:H, :]
    left = xp_ref[:, :, pad:pad + 1]                       # read back -> corners replicate
    right = xp_ref[:, :, pad + W - 1:pad + W]
    for c in range(pad):                                   # left / right cols (lane dim)
        xp_ref[:, :, c:c + 1] = left
        xp_ref[:, :, pad + W + c:pad + W + c + 1] = right

    # --- 9-tap depthwise conv: sum equal-weight shifted slices, then scale ---
    acc = None
    for w, taps in weight_groups:
        s = None
        for (i, j) in taps:                                # static offsets into padded tile
            t = xp_ref[:, i:i + H, j:j + W]
            s = t if s is None else s + t
        term = s * w                                       # weight already includes 1/ksum
        acc = term if acc is None else acc + term
    o_ref[...] = acc.astype(o_ref.dtype)


# ----------------------------- wrapper -----------------------------

# Per-block input budget: in + out double-buffered plus the f32 scratch stays well
# under the default scoped-VMEM limit on v5e/v6e/v7x.
_BLOCK_BUDGET_BYTES = 2 * 1024 * 1024


def svls_filter_2d(x, *, ksize=3, sigma=1.0):
    """Depthwise SVLS Gaussian filter matching get_svls_filter_2d.forward.
    x: (N, C, H, W)."""
    svls_kernel, ksum = make_svls_params(ksize=ksize, sigma=sigma)
    weight_groups = _group_scaled_weights(svls_kernel, ksum)
    N, C, H, W = x.shape
    pad = ksize // 2
    NC = N * C

    # Free reshape (merges contiguous leading dims): no HBM round-trip, unlike a
    # channels-last transpose.  W lands on the lane axis, H on sublanes.
    xv = x.reshape(NC, H, W)

    per_image_bytes = H * W * x.dtype.itemsize
    nc_block = min(NC, max(1, _BLOCK_BUDGET_BYTES // per_image_bytes))
    grid = (pl.cdiv(NC, nc_block),)
    # Non-dividing NC is fine: the out-of-bounds tail of the last block is garbage
    # on read and masked on write, and there is no cross-channel coupling.
    # TODO(synk): for images where a single (1, H, W) channel slab exceeds VMEM,
    # add spatial (H-row) tiling with an in-kernel replicate halo.

    kernel = functools.partial(
        _svls_conv_kernel, weight_groups=weight_groups, H=H, W=W, pad=pad
    )
    out = pl.pallas_call(
        kernel,
        out_shape=jax.ShapeDtypeStruct((NC, H, W), x.dtype),
        grid=grid,
        in_specs=[pl.BlockSpec((nc_block, H, W), lambda i: (i, 0, 0))],
        out_specs=pl.BlockSpec((nc_block, H, W), lambda i: (i, 0, 0)),
        scratch_shapes=[pltpu.VMEM((nc_block, H + 2 * pad, W + 2 * pad), jnp.float32)],
        compiler_params=pltpu.CompilerParams(
            dimension_semantics=("parallel",),   # NC tiles are independent -> megacore
        ),
    )(xv)

    return out.reshape(N, C, H, W)


# ----------------------------- reference (pure JAX) -----------------------------

def svls_filter_2d_ref(x, *, ksize=3, sigma=1.0):
    svls_kernel, ksum = make_svls_params(ksize=ksize, sigma=sigma)
    N, C, H, W = x.shape
    pad = ksize // 2
    xp = jnp.pad(x, ((0, 0), (0, 0), (pad, pad), (pad, pad)), mode="edge")
    acc = jnp.zeros((N, C, H, W), dtype=jnp.float32)
    for dy in range(ksize):
        for dx in range(ksize):
            acc = acc + float(svls_kernel[dy, dx]) * xp[:, :, dy:dy + H, dx:dx + W]
    return acc / ksum


# ----------------------------- main -----------------------------

if __name__ == "__main__":
    key = jax.random.PRNGKey(0)
    N, C, H, W = 2, 4, 16, 16
    x = jax.random.normal(key, (N, C, H, W), dtype=jnp.float32)

    out = svls_filter_2d(x, ksize=3, sigma=1.0)
    out = jax.block_until_ready(out)

    ref = svls_filter_2d_ref(x, ksize=3, sigma=1.0)
    np.testing.assert_allclose(np.asarray(out), np.asarray(ref), rtol=1e-5, atol=1e-5)

    print("KERNEL_OK")
</pallas_src>

<mosaic_0001>
module attributes {stable_mosaic.version = 11 : i64} {
  func.func @_svls_conv_kernel(%arg0: i32, %arg1: memref<8x16x16xf32, #tpu.memory_space<vmem>>, %arg2: memref<8x16x16xf32, #tpu.memory_space<vmem>>, %arg3: memref<8x18x18xf32, #tpu.memory_space<vmem>>) attributes {dimension_semantics = [#tpu.dimension_semantics<parallel>], iteration_bounds = array<i64: 1>, scalar_prefetch = 0 : i64, scratch_operands = 1 : i64, tpu.core_type = #tpu.core_type<tc>, window_params = [{transform_indices = @transform_0, window_bounds = array<i64: 8, 16, 16>}, {transform_indices = @transform_1, window_bounds = array<i64: 8, 16, 16>}]} {
    %c0 = arith.constant 0 : index
    %c0_0 = arith.constant 0 : index
    %c0_1 = arith.constant 0 : index
    %0 = vector.load %arg1[%c0, %c0_0, %c0_1] : memref<8x16x16xf32, #tpu.memory_space<vmem>>, vector<8x16x16xf32>
    %c0_2 = arith.constant 0 : index
    %c1 = arith.constant 1 : index
    %c1_3 = arith.constant 1 : index
    %1 = vector.load %arg3[%c0_2, %c1, %c1_3] : memref<8x18x18xf32, #tpu.memory_space<vmem>>, vector<8x16x16xf32>
    tpu.vector_store %arg3[%c0_2, %c1, %c1_3], %0 {strides = array<i32>} : memref<8x18x18xf32, #tpu.memory_space<vmem>>, vector<8x16x16xf32>,
    %2 = vector.extract_strided_slice %0 {offsets = [0, 0, 0], sizes = [8, 1, 16], strides = [1, 1, 1]} : vector<8x16x16xf32> to vector<8x1x16xf32>
    %c0_4 = arith.constant 0 : index
    %c0_5 = arith.constant 0 : index
    %c1_6 = arith.constant 1 : index
    %3 = vector.load %arg3[%c0_4, %c0_5, %c1_6] : memref<8x18x18xf32, #tpu.memory_space<vmem>>, vector<8x1x16xf32>
    tpu.vector_store %arg3[%c0_4, %c0_5, %c1_6], %2 {strides = array<i32>} : memref<8x18x18xf32, #tpu.memory_space<vmem>>, vector<8x1x16xf32>,
    %4 = vector.extract_strided_slice %0 {offsets = [0, 15, 0], sizes = [8, 1, 16], strides = [1, 1, 1]} : vector<8x16x16xf32> to vector<8x1x16xf32>
    %c0_7 = arith.constant 0 : index
    %c17 = arith.constant 17 : index
    %c1_8 = arith.constant 1 : index
    %5 = vector.load %arg3[%c0_7, %c17, %c1_8] : memref<8x18x18xf32, #tpu.memory_space<vmem>>, vector<8x1x16xf32>
    tpu.vector_store %arg3[%c0_7, %c17, %c1_8], %4 {strides = array<i32>} : memref<8x18x18xf32, #tpu.memory_space<vmem>>, vector<8x1x16xf32>,
    %c0_9 = arith.constant 0 : index
    %c0_10 = arith.constant 0 : index
    %c1_11 = arith.constant 1 : index
    %6 = vector.load %arg3[%c0_9, %c0_10, %c1_11] : memref<8x18x18xf32, #tpu.memory_space<vmem>>, vector<8x18x1xf32>
    %c0_12 = arith.constant 0 : index
    %c0_13 = arith.constant 0 : index
    %c16 = arith.constant 16 : index
    %7 = vector.load %arg3[%c0_12, %c0_13, %c16] : memref<8x18x18xf32, #tpu.memory_space<vmem>>, vector<8x18x1xf32>
    %c0_14 = arith.constant 0 : index
    %c0_15 = arith.constant 0 : index
    %c0_16 = arith.constant 0 : index
    %8 = vector.load %arg3[%c0_14, %c0_15, %c0_16] : memref<8x18x18xf32, #tpu.memory_space<vmem>>, vector<8x18x1xf32>
    tpu.vector_store %arg3[%c0_14, %c0_15, %c0_16], %6 {strides = array<i32>} : memref<8x18x18xf32, #tpu.memory_space<vmem>>, vector<8x18x1xf32>,
    %c0_17 = arith.constant 0 : index
    %c0_18 = arith.constant 0 : index
    %c17_19 = arith.constant 17 : index
    %9 = vector.load %arg3[%c0_17, %c0_18, %c17_19] : memref<8x18x18xf32, #tpu.memory_space<vmem>>, vector<8x18x1xf32>
    tpu.vector_store %arg3[%c0_17, %c0_18, %c17_19], %7 {strides = array<i32>} : memref<8x18x18xf32, #tpu.memory_space<vmem>>, vector<8x18x1xf32>,
    %c0_20 = arith.constant 0 : index
    %c0_21 = arith.constant 0 : index
    %c0_22 = arith.constant 0 : index
    %10 = vector.load %arg3[%c0_20, %c0_21, %c0_22] : memref<8x18x18xf32, #tpu.memory_space<vmem>>, vector<8x16x16xf32>
    %c0_23 = arith.constant 0 : index
    %c0_24 = arith.constant 0 : index
    %c2 = arith.constant 2 : index
    %11 = vector.load %arg3[%c0_23, %c0_24, %c2] : memref<8x18x18xf32, #tpu.memory_space<vmem>>, vector<8x16x16xf32>
    %12 = arith.addf %10, %11 : vector<8x16x16xf32>
    %c0_25 = arith.constant 0 : index
    %c2_26 = arith.constant 2 : index
    %c0_27 = arith.constant 0 : index
    %13 = vector.load %arg3[%c0_25, %c2_26, %c0_27] : memref<8x18x18xf32, #tpu.memory_space<vmem>>, vector<8x16x16xf32>
    %14 = arith.addf %12, %13 : vector<8x16x16xf32>
    %c0_28 = arith.constant 0 : index
    %c2_29 = arith.constant 2 : index
    %c2_30 = arith.constant 2 : index
    %15 = vector.load %arg3[%c0_28, %c2_29, %c2_30] : memref<8x18x18xf32, #tpu.memory_space<vmem>>, vector<8x16x16xf32>
    %16 = arith.addf %14, %15 : vector<8x16x16xf32>
    %cst = arith.constant 0.0471925847 : f32
    %17 = vector.broadcast %cst : f32 to vector<8x16x16xf32>
    %18 = arith.mulf %16, %17 : vector<8x16x16xf32>
    %c0_31 = arith.constant 0 : index
    %c0_32 = arith.constant 0 : index
    %c1_33 = arith.constant 1 : index
    %19 = vector.load %arg3[%c0_31, %c0_32, %c1_33] : memref<8x18x18xf32, #tpu.memory_space<vmem>>, vector<8x16x16xf32>
    %c0_34 = arith.constant 0 : index
    %c1_35 = arith.constant 1 : index
    %c0_36 = arith.constant 0 : index
    %20 = vector.load %arg3[%c0_34, %c1_35, %c0_36] : memref<8x18x18xf32, #tpu.memory_space<vmem>>, vector<8x16x16xf32>
    %21 = arith.addf %19, %20 : vector<8x16x16xf32>
    %c0_37 = arith.constant 0 : index
    %c1_38 = arith.constant 1 : index
    %c2_39 = arith.constant 2 : index
    %22 = vector.load %arg3[%c0_37, %c1_38, %c2_39] : memref<8x18x18xf32, #tpu.memory_space<vmem>>, vector<8x16x16xf32>
    %23 = arith.addf %21, %22 : vector<8x16x16xf32>
    %c0_40 = arith.constant 0 : index
    %c2_41 = arith.constant 2 : index
    %c1_42 = arith.constant 1 : index
    %24 = vector.load %arg3[%c0_40, %c2_41, %c1_42] : memref<8x18x18xf32, #tpu.memory_space<vmem>>, vector<8x16x16xf32>
    %25 = arith.addf %23, %24 : vector<8x16x16xf32>
    %cst_43 = arith.constant 0.077807419 : f32
    %26 = vector.broadcast %cst_43 : f32 to vector<8x16x16xf32>
    %27 = arith.mulf %25, %26 : vector<8x16x16xf32>
    %28 = arith.addf %18, %27 : vector<8x16x16xf32>
    %c0_44 = arith.constant 0 : index
    %c1_45 = arith.constant 1 : index
    %c1_46 = arith.constant 1 : index
    %29 = vector.load %arg3[%c0_44, %c1_45, %c1_46] : memref<8x18x18xf32, #tpu.memory_space<vmem>>, vector<8x16x16xf32>
    %cst_47 = arith.constant 5.000000e-01 : f32
    %30 = vector.broadcast %cst_47 : f32 to vector<8x16x16xf32>
    %31 = arith.mulf %29, %30 : vector<8x16x16xf32>
    %32 = arith.addf %28, %31 : vector<8x16x16xf32>
    %c0_48 = arith.constant 0 : index
    %c0_49 = arith.constant 0 : index
    %c0_50 = arith.constant 0 : index
    %33 = vector.load %arg2[%c0_48, %c0_49, %c0_50] : memref<8x16x16xf32, #tpu.memory_space<vmem>>, vector<8x16x16xf32>
    tpu.vector_store %arg2[%c0_48, %c0_49, %c0_50], %32 {strides = array<i32>} : memref<8x16x16xf32, #tpu.memory_space<vmem>>, vector<8x16x16xf32>,
    return
  }
  func.func @transform_0(%arg0: i32) -> (i32, i32, i32) {
    %c0_i32 = arith.constant 0 : i32
    %c0_i32_0 = arith.constant 0 : i32
    %c0_i32_1 = arith.constant 0 : i32
    return %arg0, %c0_i32, %c0_i32_0 : i32, i32, i32
  }
  func.func @transform_1(%arg0: i32) -> (i32, i32, i32) {
    %c0_i32 = arith.constant 0 : i32
    %c0_i32_0 = arith.constant 0 : i32
    %c0_i32_1 = arith.constant 0 : i32
    return %arg0, %c0_i32, %c0_i32_0 : i32, i32, i32
  }
}

</mosaic_0001>

<llo_original>
// kernel: tpu_custom_call.1
$region0: #{tpu_custom_call.1}
  #allocation0 [shape = 'u32[]', space=smem, size = 0x4, offset = 0x4, fixed_abs, tag = 'smem constant byte address 0x4 - core index']
  #allocation1 [shape = 'u32[144,128]{1,0:T(1,128)}', space=vmem, size = 0x12000, scoped, tag = 'internal scratch']
  #allocation2 [shape = 'f32[8,18,18]{2,1,0:T(8,128)}', space=vmem, size = 0x18000, scoped, tag = 'scratch operand']
  %s0 = inlined_call_operand.hbm [shape: f32[8,16,16], index: 0, kind: input, shape index: {}]
  %s1 = inlined_call_operand.hbm [shape: f32[8,16,16], index: 1, kind: output, shape index: {}]
  %s2 = sld [smem:[#allocation0]]
  $region18: #{tpu_custom_call.1} parent=0
    _
  %s4 = ssub.s32 1, %s2
  %s5 = scalar_select 0, %s4, %s2
  $region1: #{tpu_custom_call.1} parent=0
    #allocation3 [shape = 'u8[65536]{0}', space=vmem, size = 0x10000, scoped, tag = 'input window, operand 0, single buffered']
    #allocation4 [shape = 's32[1]{0}', space=sflag, size = 0x4, scoped, tag = 'scoped memory for tpu_custom_call.1']
    #allocation5 [shape = 's32[1]{0}', space=sflag, size = 0x4, scoped, tag = 'scoped memory for tpu_custom_call.1']
    #allocation6 [shape = 'u8[65536]{0}', space=vmem, size = 0x10000, scoped, tag = 'output window, operand 0, single buffered']
    %6 = vsyncpa [#allocation4], 0
    %7 = vsyncpa [#allocation5], 0
    // Predicated region
    $region2: #{tpu_custom_call.1} parent=1 // pred_check
      _
    $region3: #{tpu_custom_call.1} parent=1 // pred_check_branch
      %9 = sbr.rel (0) target = $region5
    $region4: #{tpu_custom_call.1} parent=1 // pred_region
      %s11 = ssub.s32 2048, 2048
      %12 = vsyncadd [#allocation4], %s11
      %s13 = sshll.u32 [#allocation3], 4
      %s14 = int_to_ptr.vmem [resolvable:$true] %s13
      %19 = dma.hbm_to_vmem [thread:$0]  %s0, 2048, %s14, [#allocation4], 128, 128, 8
    $region5: #{tpu_custom_call.1} parent=1 // pred_fallthru
      _
    // Predicated region
    $region6: #{tpu_custom_call.1} parent=1 // pred_check
      _
    $region7: #{tpu_custom_call.1} parent=1 // pred_check_branch
      %21 = sbr.rel (0) target = $region9
    $region8: #{tpu_custom_call.1} parent=1 // pred_region
      %22 = dma.done [#allocation4], 2048
    $region9: #{tpu_custom_call.1} parent=1 // pred_fallthru
      _
    %v23 = vld [vmem:[#allocation3] sm:$0xff]
    %v24 = vld [vmem:[#allocation3 + $0x8] sm:$0xff]
    %v25 = vld [vmem:[#allocation3 + $0x10] sm:$0xff]
    %v26 = vld [vmem:[#allocation3 + $0x18] sm:$0xff]
    %v27 = vld [vmem:[#allocation3 + $0x20] sm:$0xff]
    %v28 = vld [vmem:[#allocation3 + $0x28] sm:$0xff]
    %v29 = vld [vmem:[#allocation3 + $0x30] sm:$0xff]
    %v30 = vld [vmem:[#allocation3 + $0x38] sm:$0xff]
    %v31 = vld [vmem:[#allocation3 + $0x40] sm:$0xff]
    %v32 = vld [vmem:[#allocation3 + $0x48] sm:$0xff]
    %v33 = vld [vmem:[#allocation3 + $0x50] sm:$0xff]
    %v34 = vld [vmem:[#allocation3 + $0x58] sm:$0xff]
    %v35 = vld [vmem:[#allocation3 + $0x60] sm:$0xff]
    %v36 = vld [vmem:[#allocation3 + $0x68] sm:$0xff]
    %v37 = vld [vmem:[#allocation3 + $0x70] sm:$0xff]
    %v38 = vld [vmem:[#allocation3 + $0x78] sm:$0xff]
    %55 = vrot.lane.b32.xlu0 %v23, 1
    %v56 = vpop.permute.xlu0 %55
    %57 = vrot.lane.b32.xlu0 %v24, 1
    %v58 = vpop.permute.xlu0 %57
    %59 = vrot.lane.b32.xlu0 %v25, 1
    %v60 = vpop.permute.xlu0 %59
    %61 = vrot.lane.b32.xlu0 %v26, 1
    %v62 = vpop.permute.xlu0 %61
    %63 = vrot.lane.b32.xlu0 %v27, 1
    %v64 = vpop.permute.xlu0 %63
    %65 = vrot.lane.b32.xlu0 %v28, 1
    %v66 = vpop.permute.xlu0 %65
    %67 = vrot.lane.b32.xlu0 %v29, 1
    %v68 = vpop.permute.xlu0 %67
    %69 = vrot.lane.b32.xlu0 %v30, 1
    %v70 = vpop.permute.xlu0 %69
    %71 = vrot.lane.b32.xlu0 %v31, 1
    %v72 = vpop.permute.xlu0 %71
    %73 = vrot.lane.b32.xlu0 %v32, 1
    %v74 = vpop.permute.xlu0 %73
    %75 = vrot.lane.b32.xlu0 %v33, 1
    %v76 = vpop.permute.xlu0 %75
    %77 = vrot.lane.b32.xlu0 %v34, 1
    %v78 = vpop.permute.xlu0 %77
    %79 = vrot.lane.b32.xlu0 %v35, 1
    %v80 = vpop.permute.xlu0 %79
    %81 = vrot.lane.b32.xlu0 %v36, 1
    %v82 = vpop.permute.xlu0 %81
    %83 = vrot.lane.b32.xlu0 %v37, 1
    %v84 = vpop.permute.xlu0 %83
    %85 = vrot.lane.b32.xlu0 %v38, 1
    %v86 = vpop.permute.xlu0 %85
    %vm103 = vcmask 138248
    %104 = vst.msk [vmem:[#allocation2 + $0x1] sm:$0xff] %vm103, %v56
    %105 = vst.msk [vmem:[#allocation2 + $0x9] sm:$0xff] %vm103, %v58
    %106 = vst.msk [vmem:[#allocation2 + $0x19] sm:$0xff] %vm103, %v60
    %107 = vst.msk [vmem:[#allocation2 + $0x21] sm:$0xff] %vm103, %v62
    %108 = vst.msk [vmem:[#allocation2 + $0x31] sm:$0xff] %vm103, %v64
    %109 = vst.msk [vmem:[#allocation2 + $0x39] sm:$0xff] %vm103, %v66
    %110 = vst.msk [vmem:[#allocation2 + $0x49] sm:$0xff] %vm103, %v68
    %111 = vst.msk [vmem:[#allocation2 + $0x51] sm:$0xff] %vm103, %v70
    %112 = vst.msk [vmem:[#allocation2 + $0x61] sm:$0xff] %vm103, %v72
    %113 = vst.msk [vmem:[#allocation2 + $0x69] sm:$0xff] %vm103, %v74
    %114 = vst.msk [vmem:[#allocation2 + $0x79] sm:$0xff] %vm103, %v76
    %115 = vst.msk [vmem:[#allocation2 + $0x81] sm:$0xff] %vm103, %v78
    %116 = vst.msk [vmem:[#allocation2 + $0x91] sm:$0xff] %vm103, %v80
    %117 = vst.msk [vmem:[#allocation2 + $0x99] sm:$0xff] %vm103, %v82
    %118 = vst.msk [vmem:[#allocation2 + $0xa9] sm:$0xff] %vm103, %v84
    %119 = vst.msk [vmem:[#allocation2 + $0xb1] sm:$0xff] %vm103, %v86
    %vm120 = vcmask 131080
    %121 = vst.msk [vmem:[#allocation2] sm:$0x1] %vm120, %v56
    %122 = vst.msk [vmem:[#allocation2 + $0x18] sm:$0x1] %vm120, %v60
    %123 = vst.msk [vmem:[#allocation2 + $0x30] sm:$0x1] %vm120, %v64
    %124 = vst.msk [vmem:[#allocation2 + $0x48] sm:$0x1] %vm120, %v68
    %125 = vst.msk [vmem:[#allocation2 + $0x60] sm:$0x1] %vm120, %v72
    %126 = vst.msk [vmem:[#allocation2 + $0x78] sm:$0x1] %vm120, %v76
    %127 = vst.msk [vmem:[#allocation2 + $0x90] sm:$0x1] %vm120, %v80
    %128 = vst.msk [vmem:[#allocation2 + $0xa8] sm:$0x1] %vm120, %v84
    %vm129 = vcmask 138255
    %130 = vst.msk [vmem:[#allocation2 + $0xa] sm:$0x80] %vm129, %v58
    %131 = vst.msk [vmem:[#allocation2 + $0x22] sm:$0x80] %vm129, %v62
    %132 = vst.msk [vmem:[#allocation2 + $0x3a] sm:$0x80] %vm129, %v66
    %133 = vst.msk [vmem:[#allocation2 + $0x52] sm:$0x80] %vm129, %v70
    %134 = vst.msk [vmem:[#allocation2 + $0x6a] sm:$0x80] %vm129, %v74
    %135 = vst.msk [vmem:[#allocation2 + $0x82] sm:$0x80] %vm129, %v78
    %136 = vst.msk [vmem:[#allocation2 + $0x9a] sm:$0x80] %vm129, %v82
    %137 = vst.msk [vmem:[#allocation2 + $0xb2] sm:$0x80] %vm129, %v86
    %v138 = vld [vmem:[#allocation2] sm:$0xff]
    %v139 = vld [vmem:[#allocation2 + $0x8] sm:$0xff]
    %v140 = vld [vmem:[#allocation2 + $0x10] sm:$0x3]
    %v141 = vld [vmem:[#allocation2 + $0x18] sm:$0xff]
    %v142 = vld [vmem:[#allocation2 + $0x20] sm:$0xff]
    %v143 = vld [vmem:[#allocation2 + $0x28] sm:$0x3]
    %v144 = vld [vmem:[#allocation2 + $0x30] sm:$0xff]
    %v145 = vld [vmem:[#allocation2 + $0x38] sm:$0xff]
    %v146 = vld [vmem:[#allocation2 + $0x40] sm:$0x3]
    %v147 = vld [vmem:[#allocation2 + $0x48] sm:$0xff]
    %v148 = vld [vmem:[#allocation2 + $0x50] sm:$0xff]
    %v149 = vld [vmem:[#allocation2 + $0x58] sm:$0x3]
    %v150 = vld [vmem:[#allocation2 + $0x60] sm:$0xff]
    %v151 = vld [vmem:[#allocation2 + $0x68] sm:$0xff]
    %v152 = vld [vmem:[#allocation2 + $0x70] sm:$0x3]
    %v153 = vld [vmem:[#allocation2 + $0x78] sm:$0xff]
    %v154 = vld [vmem:[#allocation2 + $0x80] sm:$0xff]
    %v155 = vld [vmem:[#allocation2 + $0x88] sm:$0x3]
    %v156 = vld [vmem:[#allocation2 + $0x90] sm:$0xff]
    %v157 = vld [vmem:[#allocation2 + $0x98] sm:$0xff]
    %v158 = vld [vmem:[#allocation2 + $0xa0] sm:$0x3]
    %v159 = vld [vmem:[#allocation2 + $0xa8] sm:$0xff]
    %v160 = vld [vmem:[#allocation2 + $0xb0] sm:$0xff]
    %v161 = vld [vmem:[#allocation2 + $0xb8] sm:$0x3]
    %186 = vrot.lane.b32.xlu0 %v138, 127
    %v187 = vpop.permute.xlu0 %186
    %188 = vrot.lane.b32.xlu0 %v139, 127
    %v189 = vpop.permute.xlu0 %188
    %190 = vrot.lane.b32.xlu0 %v140, 127
    %v191 = vpop.permute.xlu0 %190
    %192 = vrot.lane.b32.xlu0 %v141, 127
    %v193 = vpop.permute.xlu0 %192
    %194 = vrot.lane.b32.xlu0 %v142, 127
    %v195 = vpop.permute.xlu0 %194
    %196 = vrot.lane.b32.xlu0 %v143, 127
    %v197 = vpop.permute.xlu0 %196
    %198 = vrot.lane.b32.xlu0 %v144, 127
    %v199 = vpop.permute.xlu0 %198
    %200 = vrot.lane.b32.xlu0 %v145, 127
    %v201 = vpop.permute.xlu0 %200
    %202 = vrot.lane.b32.xlu0 %v146, 127
    %v203 = vpop.permute.xlu0 %202
    %204 = vrot.lane.b32.xlu0 %v147, 127
    %v205 = vpop.permute.xlu0 %204
    %206 = vrot.lane.b32.xlu0 %v148, 127
    %v207 = vpop.permute.xlu0 %206
    %208 = vrot.lane.b32.xlu0 %v149, 127
    %v209 = vpop.permute.xlu0 %208
    %210 = vrot.lane.b32.xlu0 %v150, 127
    %v211 = vpop.permute.xlu0 %210
    %212 = vrot.lane.b32.xlu0 %v151, 127
    %v213 = vpop.permute.xlu0 %212
    %214 = vrot.lane.b32.xlu0 %v152, 127
    %v215 = vpop.permute.xlu0 %214
    %216 = vrot.lane.b32.xlu0 %v153, 127
    %v217 = vpop.permute.xlu0 %216
    %218 = vrot.lane.b32.xlu0 %v154, 127
    %v219 = vpop.permute.xlu0 %218
    %220 = vrot.lane.b32.xlu0 %v155, 127
    %v221 = vpop.permute.xlu0 %220
    %222 = vrot.lane.b32.xlu0 %v156, 127
    %v223 = vpop.permute.xlu0 %222
    %224 = vrot.lane.b32.xlu0 %v157, 127
    %v225 = vpop.permute.xlu0 %224
    %226 = vrot.lane.b32.xlu0 %v158, 127
    %v227 = vpop.permute.xlu0 %226
    %228 = vrot.lane.b32.xlu0 %v159, 127
    %v229 = vpop.permute.xlu0 %228
    %230 = vrot.lane.b32.xlu0 %v160, 127
    %v231 = vpop.permute.xlu0 %230
    %232 = vrot.lane.b32.xlu0 %v161, 127
    %v233 = vpop.permute.xlu0 %232
    %vm258 = vcmask 7168
    %259 = vst.msk [vmem:[#allocation2] sm:$0xff] %vm258, %v187
    %260 = vst.msk [vmem:[#allocation2 + $0x8] sm:$0xff] %vm258, %v189
    %vm261 = vcmask 1024
    %262 = vst.msk [vmem:[#allocation2 + $0x10] sm:$0x3] %vm261, %v191
    %263 = vst.msk [vmem:[#allocation2 + $0x18] sm:$0xff] %vm258, %v193
    %264 = vst.msk [vmem:[#allocation2 + $0x20] sm:$0xff] %vm258, %v195
    %265 = vst.msk [vmem:[#allocation2 + $0x28] sm:$0x3] %vm261, %v197
    %266 = vst.msk [vmem:[#allocation2 + $0x30] sm:$0xff] %vm258, %v199
    %267 = vst.msk [vmem:[#allocation2 + $0x38] sm:$0xff] %vm258, %v201
    %268 = vst.msk [vmem:[#allocation2 + $0x40] sm:$0x3] %vm261, %v203
    %269 = vst.msk [vmem:[#allocation2 + $0x48] sm:$0xff] %vm258, %v205
    %270 = vst.msk [vmem:[#allocation2 + $0x50] sm:$0xff] %vm258, %v207
    %271 = vst.msk [vmem:[#allocation2 + $0x58] sm:$0x3] %vm261, %v209
    %272 = vst.msk [vmem:[#allocation2 + $0x60] sm:$0xff] %vm258, %v211
    %273 = vst.msk [vmem:[#allocation2 + $0x68] sm:$0xff] %vm258, %v213
    %274 = vst.msk [vmem:[#allocation2 + $0x70] sm:$0x3] %vm261, %v215
    %275 = vst.msk [vmem:[#allocation2 + $0x78] sm:$0xff] %vm258, %v217
    %276 = vst.msk [vmem:[#allocation2 + $0x80] sm:$0xff] %vm258, %v219
    %277 = vst.msk [vmem:[#allocation2 + $0x88] sm:$0x3] %vm261, %v221
    %278 = vst.msk [vmem:[#allocation2 + $0x90] sm:$0xff] %vm258, %v223
    %279 = vst.msk [vmem:[#allocation2 + $0x98] sm:$0xff] %vm258, %v225
    %280 = vst.msk [vmem:[#allocation2 + $0xa0] sm:$0x3] %vm261, %v227
    %281 = vst.msk [vmem:[#allocation2 + $0xa8] sm:$0xff] %vm258, %v229
    %282 = vst.msk [vmem:[#allocation2 + $0xb0] sm:$0xff] %vm258, %v231
    %283 = vst.msk [vmem:[#allocation2 + $0xb8] sm:$0x3] %vm261, %v233
    %284 = vrot.lane.b32.xlu0 %v138, 1
    %v285 = vpop.permute.xlu0 %284
    %286 = vrot.lane.b32.xlu0 %v139, 1
    %v287 = vpop.permute.xlu0 %286
    %288 = vrot.lane.b32.xlu0 %v140, 1
    %v289 = vpop.permute.xlu0 %288
    %290 = vrot.lane.b32.xlu0 %v141, 1
    %v291 = vpop.permute.xlu0 %290
    %292 = vrot.lane.b32.xlu0 %v142, 1
    %v293 = vpop.permute.xlu0 %292
    %294 = vrot.lane.b32.xlu0 %v143, 1
    %v295 = vpop.permute.xlu0 %294
    %296 = vrot.lane.b32.xlu0 %v144, 1
    %v297 = vpop.permute.xlu0 %296
    %298 = vrot.lane.b32.xlu0 %v145, 1
    %v299 = vpop.permute.xlu0 %298
    %300 = vrot.lane.b32.xlu0 %v146, 1
    %v301 = vpop.permute.xlu0 %300
    %302 = vrot.lane.b32.xlu0 %v147, 1
    %v303 = vpop.permute.xlu0 %302
    %304 = vrot.lane.b32.xlu0 %v148, 1
    %v305 = vpop.permute.xlu0 %304
    %306 = vrot.lane.b32.xlu0 %v149, 1
    %v307 = vpop.permute.xlu0 %306
    %308 = vrot.lane.b32.xlu0 %v150, 1
    %v309 = vpop.permute.xlu0 %308
    %310 = vrot.lane.b32.xlu0 %v151, 1
    %v311 = vpop.permute.xlu0 %310
    %312 = vrot.lane.b32.xlu0 %v152, 1
    %v313 = vpop.permute.xlu0 %312
    %314 = vrot.lane.b32.xlu0 %v153, 1
    %v315 = vpop.permute.xlu0 %314
    %316 = vrot.lane.b32.xlu0 %v154, 1
    %v317 = vpop.permute.xlu0 %316
    %318 = vrot.lane.b32.xlu0 %v155, 1
    %v319 = vpop.permute.xlu0 %318
    %320 = vrot.lane.b32.xlu0 %v156, 1
    %v321 = vpop.permute.xlu0 %320
    %322 = vrot.lane.b32.xlu0 %v157, 1
    %v323 = vpop.permute.xlu0 %322
    %324 = vrot.lane.b32.xlu0 %v158, 1
    %v325 = vpop.permute.xlu0 %324
    %326 = vrot.lane.b32.xlu0 %v159, 1
    %v327 = vpop.permute.xlu0 %326
    %328 = vrot.lane.b32.xlu0 %v160, 1
    %v329 = vpop.permute.xlu0 %328
    %330 = vrot.lane.b32.xlu0 %v161, 1
    %v331 = vpop.permute.xlu0 %330
    %vm356 = vcmask 146568
    %357 = vst.msk [vmem:[#allocation2] sm:$0xff] %vm356, %v285
    %358 = vst.msk [vmem:[#allocation2 + $0x8] sm:$0xff] %vm356, %v287
    %vm359 = vcmask 140424
    %360 = vst.msk [vmem:[#allocation2 + $0x10] sm:$0x3] %vm359, %v289
    %361 = vst.msk [vmem:[#allocation2 + $0x18] sm:$0xff] %vm356, %v291
    %362 = vst.msk [vmem:[#allocation2 + $0x20] sm:$0xff] %vm356, %v293
    %363 = vst.msk [vmem:[#allocation2 + $0x28] sm:$0x3] %vm359, %v295
    %364 = vst.msk [vmem:[#allocation2 + $0x30] sm:$0xff] %vm356, %v297
    %365 = vst.msk [vmem:[#allocation2 + $0x38] sm:$0xff] %vm356, %v299
    %366 = vst.msk [vmem:[#allocation2 + $0x40] sm:$0x3] %vm359, %v301
    %367 = vst.msk [vmem:[#allocation2 + $0x48] sm:$0xff] %vm356, %v303
    %368 = vst.msk [vmem:[#allocation2 + $0x50] sm:$0xff] %vm356, %v305
    %369 = vst.msk [vmem:[#allocation2 + $0x58] sm:$0x3] %vm359, %v307
    %370 = vst.msk [vmem:[#allocation2 + $0x60] sm:$0xff] %vm356, %v309
    %371 = vst.msk [vmem:[#allocation2 + $0x68] sm:$0xff] %vm356, %v311
    %372 = vst.msk [vmem:[#allocation2 + $0x70] sm:$0x3] %vm359, %v313
    %373 = vst.msk [vmem:[#allocation2 + $0x78] sm:$0xff] %vm356, %v315
    %374 = vst.msk [vmem:[#allocation2 + $0x80] sm:$0xff] %vm356, %v317
    %375 = vst.msk [vmem:[#allocation2 + $0x88] sm:$0x3] %vm359, %v319
    %376 = vst.msk [vmem:[#allocation2 + $0x90] sm:$0xff] %vm356, %v321
    %377 = vst.msk [vmem:[#allocation2 + $0x98] sm:$0xff] %vm356, %v323
    %378 = vst.msk [vmem:[#allocation2 + $0xa0] sm:$0x3] %vm359, %v325
    %379 = vst.msk [vmem:[#allocation2 + $0xa8] sm:$0xff] %vm356, %v327
    %380 = vst.msk [vmem:[#allocation2 + $0xb0] sm:$0xff] %vm356, %v329
    %381 = vst.msk [vmem:[#allocation2 + $0xb8] sm:$0x3] %vm359, %v331
    %v382 = vld [vmem:[#allocation2] sm:$0xff]
    %v383 = vld [vmem:[#allocation2 + $0x8] sm:$0xff]
    %v384 = vld [vmem:[#allocation2 + $0x18] sm:$0xff]
    %v385 = vld [vmem:[#allocation2 + $0x20] sm:$0xff]
    %v386 = vld [vmem:[#allocation2 + $0x30] sm:$0xff]
    %v387 = vld [vmem:[#allocation2 + $0x38] sm:$0xff]
    %v388 = vld [vmem:[#allocation2 + $0x48] sm:$0xff]
    %v389 = vld [vmem:[#allocation2 + $0x50] sm:$0xff]
    %v390 = vld [vmem:[#allocation2 + $0x60] sm:$0xff]
    %v391 = vld [vmem:[#allocation2 + $0x68] sm:$0xff]
    %v392 = vld [vmem:[#allocation2 + $0x78] sm:$0xff]
    %v393 = vld [vmem:[#allocation2 + $0x80] sm:$0xff]
    %v394 = vld [vmem:[#allocation2 + $0x90] sm:$0xff]
    %v395 = vld [vmem:[#allocation2 + $0x98] sm:$0xff]
    %v396 = vld [vmem:[#allocation2 + $0xa8] sm:$0xff]
    %v397 = vld [vmem:[#allocation2 + $0xb0] sm:$0xff]
    %414 = vrot.lane.b32.xlu0 %v382, 126
    %v415 = vpop.permute.xlu0 %414
    %416 = vrot.lane.b32.xlu0 %v383, 126
    %v417 = vpop.permute.xlu0 %416
    %418 = vrot.lane.b32.xlu0 %v384, 126
    %v419 = vpop.permute.xlu0 %418
    %420 = vrot.lane.b32.xlu0 %v385, 126
    %v421 = vpop.permute.xlu0 %420
    %422 = vrot.lane.b32.xlu0 %v386, 126
    %v423 = vpop.permute.xlu0 %422
    %424 = vrot.lane.b32.xlu0 %v387, 126
    %v425 = vpop.permute.xlu0 %424
    %426 = vrot.lane.b32.xlu0 %v388, 126
    %v427 = vpop.permute.xlu0 %426
    %428 = vrot.lane.b32.xlu0 %v389, 126
    %v429 = vpop.permute.xlu0 %428
    %430 = vrot.lane.b32.xlu0 %v390, 126
    %v431 = vpop.permute.xlu0 %430
    %432 = vrot.lane.b32.xlu0 %v391, 126
    %v433 = vpop.permute.xlu0 %432
    %434 = vrot.lane.b32.xlu0 %v392, 126
    %v435 = vpop.permute.xlu0 %434
    %436 = vrot.lane.b32.xlu0 %v393, 126
    %v437 = vpop.permute.xlu0 %436
    %438 = vrot.lane.b32.xlu0 %v394, 126
    %v439 = vpop.permute.xlu0 %438
    %440 = vrot.lane.b32.xlu0 %v395, 126
    %v441 = vpop.permute.xlu0 %440
    %442 = vrot.lane.b32.xlu0 %v396, 126
    %v443 = vpop.permute.xlu0 %442
    %444 = vrot.lane.b32.xlu0 %v397, 126
    %v445 = vpop.permute.xlu0 %444
    %v462 = vadd.f32 %v382, %v415
    %v463 = vadd.f32 %v383, %v417
    %v464 = vadd.f32 %v384, %v419
    %v465 = vadd.f32 %v385, %v421
    %v466 = vadd.f32 %v386, %v423
    %v467 = vadd.f32 %v387, %v425
    %v468 = vadd.f32 %v388, %v427
    %v469 = vadd.f32 %v389, %v429
    %v470 = vadd.f32 %v390, %v431
    %v471 = vadd.f32 %v391, %v433
    %v472 = vadd.f32 %v392, %v435
    %v473 = vadd.f32 %v393, %v437
    %v474 = vadd.f32 %v394, %v439
    %v475 = vadd.f32 %v395, %v441
    %v476 = vadd.f32 %v396, %v443
    %v477 = vadd.f32 %v397, %v445
    %v478 = vld [vmem:[#allocation2 + $0x2] sm:$0xff]
    %v479 = vld [vmem:[#allocation2 + $0xa] sm:$0xff]
    %v480 = vld [vmem:[#allocation2 + $0x1a] sm:$0xff]
    %v481 = vld [vmem:[#allocation2 + $0x22] sm:$0xff]
    %v482 = vld [vmem:[#allocation2 + $0x32] sm:$0xff]
    %v483 = vld [vmem:[#allocation2 + $0x3a] sm:$0xff]
    %v484 = vld [vmem:[#allocation2 + $0x4a] sm:$0xff]
    %v485 = vld [vmem:[#allocation2 + $0x52] sm:$0xff]
    %v486 = vld [vmem:[#allocation2 + $0x62] sm:$0xff]
    %v487 = vld [vmem:[#allocation2 + $0x6a] sm:$0xff]
    %v488 = vld [vmem:[#allocation2 + $0x7a] sm:$0xff]
    %v489 = vld [vmem:[#allocation2 + $0x82] sm:$0xff]
    %v490 = vld [vmem:[#allocation2 + $0x92] sm:$0xff]
    %v491 = vld [vmem:[#allocation2 + $0x9a] sm:$0xff]
    %v492 = vld [vmem:[#allocation2 + $0xaa] sm:$0xff]
    %v493 = vld [vmem:[#allocation2 + $0xb2] sm:$0xff]
    %v494 = vadd.f32 %v462, %v478
    %v495 = vadd.f32 %v463, %v479
    %v496 = vadd.f32 %v464, %v480
    %v497 = vadd.f32 %v465, %v481
    %v498 = vadd.f32 %v466, %v482
    %v499 = vadd.f32 %v467, %v483
    %v500 = vadd.f32 %v468, %v484
    %v501 = vadd.f32 %v469, %v485
    %v502 = vadd.f32 %v470, %v486
    %v503 = vadd.f32 %v471, %v487
    %v504 = vadd.f32 %v472, %v488
    %v505 = vadd.f32 %v473, %v489
    %v506 = vadd.f32 %v474, %v490
    %v507 = vadd.f32 %v475, %v491
    %v508 = vadd.f32 %v476, %v492
    %v509 = vadd.f32 %v477, %v493
    %526 = vrot.lane.b32.xlu0 %v478, 126
    %v527 = vpop.permute.xlu0 %526
    %528 = vrot.lane.b32.xlu0 %v479, 126
    %v529 = vpop.permute.xlu0 %528
    %530 = vrot.lane.b32.xlu0 %v480, 126
    %v531 = vpop.permute.xlu0 %530
    %532 = vrot.lane.b32.xlu0 %v481, 126
    %v533 = vpop.permute.xlu0 %532
    %534 = vrot.lane.b32.xlu0 %v482, 126
    %v535 = vpop.permute.xlu0 %534
    %536 = vrot.lane.b32.xlu0 %v483, 126
    %v537 = vpop.permute.xlu0 %536
    %538 = vrot.lane.b32.xlu0 %v484, 126
    %v539 = vpop.permute.xlu0 %538
    %540 = vrot.lane.b32.xlu0 %v485, 126
    %v541 = vpop.permute.xlu0 %540
    %542 = vrot.lane.b32.xlu0 %v486, 126
    %v543 = vpop.permute.xlu0 %542
    %544 = vrot.lane.b32.xlu0 %v487, 126
    %v545 = vpop.permute.xlu0 %544
    %546 = vrot.lane.b32.xlu0 %v488, 126
    %v547 = vpop.permute.xlu0 %546
    %548 = vrot.lane.b32.xlu0 %v489, 126
    %v549 = vpop.permute.xlu0 %548
    %550 = vrot.lane.b32.xlu0 %v490, 126
    %v551 = vpop.permute.xlu0 %550
    %552 = vrot.lane.b32.xlu0 %v491, 126
    %v553 = vpop.permute.xlu0 %552
    %554 = vrot.lane.b32.xlu0 %v492, 126
    %v555 = vpop.permute.xlu0 %554
    %556 = vrot.lane.b32.xlu0 %v493, 126
    %v557 = vpop.permute.xlu0 %556
    %v574 = vadd.f32 %v494, %v527
    %v575 = vadd.f32 %v495, %v529
    %v576 = vadd.f32 %v496, %v531
    %v577 = vadd.f32 %v497, %v533
    %v578 = vadd.f32 %v498, %v535
    %v579 = vadd.f32 %v499, %v537
    %v580 = vadd.f32 %v500, %v539
    %v581 = vadd.f32 %v501, %v541
    %v582 = vadd.f32 %v502, %v543
    %v583 = vadd.f32 %v503, %v545
    %v584 = vadd.f32 %v504, %v547
    %v585 = vadd.f32 %v505, %v549
    %v586 = vadd.f32 %v506, %v551
    %v587 = vadd.f32 %v507, %v553
    %v588 = vadd.f32 %v508, %v555
    %v589 = vadd.f32 %v509, %v557
    %v590 = vmul.f32 %v574, 0.047192585
    %v591 = vmul.f32 %v575, 0.047192585
    %v592 = vmul.f32 %v576, 0.047192585
    %v593 = vmul.f32 %v577, 0.047192585
    %v594 = vmul.f32 %v578, 0.047192585
    %v595 = vmul.f32 %v579, 0.047192585
    %v596 = vmul.f32 %v580, 0.047192585
    %v597 = vmul.f32 %v581, 0.047192585
    %v598 = vmul.f32 %v582, 0.047192585
    %v599 = vmul.f32 %v583, 0.047192585
    %v600 = vmul.f32 %v584, 0.047192585
    %v601 = vmul.f32 %v585, 0.047192585
    %v602 = vmul.f32 %v586, 0.047192585
    %v603 = vmul.f32 %v587, 0.047192585
    %v604 = vmul.f32 %v588, 0.047192585
    %v605 = vmul.f32 %v589, 0.047192585
    %v606 = vld [vmem:[#allocation2 + $0x1] sm:$0xff]
    %v607 = vld [vmem:[#allocation2 + $0x9] sm:$0xff]
    %v608 = vld [vmem:[#allocation2 + $0x19] sm:$0xff]
    %v609 = vld [vmem:[#allocation2 + $0x21] sm:$0xff]
    %v610 = vld [vmem:[#allocation2 + $0x31] sm:$0xff]
    %v611 = vld [vmem:[#allocation2 + $0x39] sm:$0xff]
    %v612 = vld [vmem:[#allocation2 + $0x49] sm:$0xff]
    %v613 = vld [vmem:[#allocation2 + $0x51] sm:$0xff]
    %v614 = vld [vmem:[#allocation2 + $0x61] sm:$0xff]
    %v615 = vld [vmem:[#allocation2 + $0x69] sm:$0xff]
    %v616 = vld [vmem:[#allocation2 + $0x79] sm:$0xff]
    %v617 = vld [vmem:[#allocation2 + $0x81] sm:$0xff]
    %v618 = vld [vmem:[#allocation2 + $0x91] sm:$0xff]
    %v619 = vld [vmem:[#allocation2 + $0x99] sm:$0xff]
    %v620 = vld [vmem:[#allocation2 + $0xa9] sm:$0xff]
    %v621 = vld [vmem:[#allocation2 + $0xb1] sm:$0xff]
    %638 = vrot.lane.b32.xlu0 %v606, 1
    %v639 = vpop.permute.xlu0 %638
    %640 = vrot.lane.b32.xlu0 %v607, 1
    %v641 = vpop.permute.xlu0 %640
    %642 = vrot.lane.b32.xlu0 %v608, 1
    %v643 = vpop.permute.xlu0 %642
    %644 = vrot.lane.b32.xlu0 %v609, 1
    %v645 = vpop.permute.xlu0 %644
    %646 = vrot.lane.b32.xlu0 %v610, 1
    %v647 = vpop.permute.xlu0 %646
    %648 = vrot.lane.b32.xlu0 %v611, 1
    %v649 = vpop.permute.xlu0 %648
    %650 = vrot.lane.b32.xlu0 %v612, 1
    %v651 = vpop.permute.xlu0 %650
    %652 = vrot.lane.b32.xlu0 %v613, 1
    %v653 = vpop.permute.xlu0 %652
    %654 = vrot.lane.b32.xlu0 %v614, 1
    %v655 = vpop.permute.xlu0 %654
    %656 = vrot.lane.b32.xlu0 %v615, 1
    %v657 = vpop.permute.xlu0 %656
    %658 = vrot.lane.b32.xlu0 %v616, 1
    %v659 = vpop.permute.xlu0 %658
    %660 = vrot.lane.b32.xlu0 %v617, 1
    %v661 = vpop.permute.xlu0 %660
    %662 = vrot.lane.b32.xlu0 %v618, 1
    %v663 = vpop.permute.xlu0 %662
    %664 = vrot.lane.b32.xlu0 %v619, 1
    %v665 = vpop.permute.xlu0 %664
    %666 = vrot.lane.b32.xlu0 %v620, 1
    %v667 = vpop.permute.xlu0 %666
    %668 = vrot.lane.b32.xlu0 %v621, 1
    %v669 = vpop.permute.xlu0 %668
    %v686 = vadd.f32 %v382, %v639
    %v687 = vadd.f32 %v383, %v641
    %v688 = vadd.f32 %v384, %v643
    %v689 = vadd.f32 %v385, %v645
    %v690 = vadd.f32 %v386, %v647
    %v691 = vadd.f32 %v387, %v649
    %v692 = vadd.f32 %v388, %v651
    %v693 = vadd.f32 %v389, %v653
    %v694 = vadd.f32 %v390, %v655
    %v695 = vadd.f32 %v391, %v657
    %v696 = vadd.f32 %v392, %v659
    %v697 = vadd.f32 %v393, %v661
    %v698 = vadd.f32 %v394, %v663
    %v699 = vadd.f32 %v395, %v665
    %v700 = vadd.f32 %v396, %v667
    %v701 = vadd.f32 %v397, %v669
    %702 = vrot.lane.b32.xlu0 %v606, 127
    %v703 = vpop.permute.xlu0 %702
    %704 = vrot.lane.b32.xlu0 %v607, 127
    %v705 = vpop.permute.xlu0 %704
    %706 = vrot.lane.b32.xlu0 %v608, 127
    %v707 = vpop.permute.xlu0 %706
    %708 = vrot.lane.b32.xlu0 %v609, 127
    %v709 = vpop.permute.xlu0 %708
    %710 = vrot.lane.b32.xlu0 %v610, 127
    %v711 = vpop.permute.xlu0 %710
    %712 = vrot.lane.b32.xlu0 %v611, 127
    %v713 = vpop.permute.xlu0 %712
    %714 = vrot.lane.b32.xlu0 %v612, 127
    %v715 = vpop.permute.xlu0 %714
    %716 = vrot.lane.b32.xlu0 %v613, 127
    %v717 = vpop.permute.xlu0 %716
    %718 = vrot.lane.b32.xlu0 %v614, 127
    %v719 = vpop.permute.xlu0 %718
    %720 = vrot.lane.b32.xlu0 %v615, 127
    %v721 = vpop.permute.xlu0 %720
    %722 = vrot.lane.b32.xlu0 %v616, 127
    %v723 = vpop.permute.xlu0 %722
    %724 = vrot.lane.b32.xlu0 %v617, 127
    %v725 = vpop.permute.xlu0 %724
    %726 = vrot.lane.b32.xlu0 %v618, 127
    %v727 = vpop.permute.xlu0 %726
    %728 = vrot.lane.b32.xlu0 %v619, 127
    %v729 = vpop.permute.xlu0 %728
    %730 = vrot.lane.b32.xlu0 %v620, 127
    %v731 = vpop.permute.xlu0 %730
    %732 = vrot.lane.b32.xlu0 %v621, 127
    %v733 = vpop.permute.xlu0 %732
    %v750 = vadd.f32 %v686, %v703
    %v751 = vadd.f32 %v687, %v705
    %v752 = vadd.f32 %v688, %v707
    %v753 = vadd.f32 %v689, %v709
    %v754 = vadd.f32 %v690, %v711
    %v755 = vadd.f32 %v691, %v713
    %v756 = vadd.f32 %v692, %v715
    %v757 = vadd.f32 %v693, %v717
    %v758 = vadd.f32 %v694, %v719
    %v759 = vadd.f32 %v695, %v721
    %v760 = vadd.f32 %v696, %v723
    %v761 = vadd.f32 %v697, %v725
    %v762 = vadd.f32 %v698, %v727
    %v763 = vadd.f32 %v699, %v729
    %v764 = vadd.f32 %v700, %v731
    %v765 = vadd.f32 %v701, %v733
    %v766 = vadd.f32 %v750, %v478
    %v767 = vadd.f32 %v751, %v479
    %v768 = vadd.f32 %v752, %v480
    %v769 = vadd.f32 %v753, %v481
    %v770 = vadd.f32 %v754, %v482
    %v771 = vadd.f32 %v755, %v483
    %v772 = vadd.f32 %v756, %v484
    %v773 = vadd.f32 %v757, %v485
    %v774 = vadd.f32 %v758, %v486
    %v775 = vadd.f32 %v759, %v487
    %v776 = vadd.f32 %v760, %v488
    %v777 = vadd.f32 %v761, %v489
    %v778 = vadd.f32 %v762, %v490
    %v779 = vadd.f32 %v763, %v491
    %v780 = vadd.f32 %v764, %v492
    %v781 = vadd.f32 %v765, %v493
    %v782 = vmul.f32 %v766, 0.07780742
    %v783 = vmul.f32 %v767, 0.07780742
    %v784 = vmul.f32 %v768, 0.07780742
    %v785 = vmul.f32 %v769, 0.07780742
    %v786 = vmul.f32 %v770, 0.07780742
    %v787 = vmul.f32 %v771, 0.07780742
    %v788 = vmul.f32 %v772, 0.07780742
    %v789 = vmul.f32 %v773, 0.07780742
    %v790 = vmul.f32 %v774, 0.07780742
    %v791 = vmul.f32 %v775, 0.07780742
    %v792 = vmul.f32 %v776, 0.07780742
    %v793 = vmul.f32 %v777, 0.07780742
    %v794 = vmul.f32 %v778, 0.07780742
    %v795 = vmul.f32 %v779, 0.07780742
    %v796 = vmul.f32 %v780, 0.07780742
    %v797 = vmul.f32 %v781, 0.07780742
    %814 = vrot.lane.b32.xlu0 %v782, 127
    %v815 = vpop.permute.xlu0 %814
    %816 = vrot.lane.b32.xlu0 %v783, 127
    %v817 = vpop.permute.xlu0 %816
    %818 = vrot.lane.b32.xlu0 %v784, 127
    %v819 = vpop.permute.xlu0 %818
    %820 = vrot.lane.b32.xlu0 %v785, 127
    %v821 = vpop.permute.xlu0 %820
    %822 = vrot.lane.b32.xlu0 %v786, 127
    %v823 = vpop.permute.xlu0 %822
    %824 = vrot.lane.b32.xlu0 %v787, 127
    %v825 = vpop.permute.xlu0 %824
    %826 = vrot.lane.b32.xlu0 %v788, 127
    %v827 = vpop.permute.xlu0 %826
    %828 = vrot.lane.b32.xlu0 %v789, 127
    %v829 = vpop.permute.xlu0 %828
    %830 = vrot.lane.b32.xlu0 %v790, 127
    %v831 = vpop.permute.xlu0 %830
    %832 = vrot.lane.b32.xlu0 %v791, 127
    %v833 = vpop.permute.xlu0 %832
    %834 = vrot.lane.b32.xlu0 %v792, 127
    %v835 = vpop.permute.xlu0 %834
    %836 = vrot.lane.b32.xlu0 %v793, 127
    %v837 = vpop.permute.xlu0 %836
    %838 = vrot.lane.b32.xlu0 %v794, 127
    %v839 = vpop.permute.xlu0 %838
    %840 = vrot.lane.b32.xlu0 %v795, 127
    %v841 = vpop.permute.xlu0 %840
    %842 = vrot.lane.b32.xlu0 %v796, 127
    %v843 = vpop.permute.xlu0 %842
    %844 = vrot.lane.b32.xlu0 %v797, 127
    %v845 = vpop.permute.xlu0 %844
    %v862 = vadd.f32 %v590, %v815
    %v863 = vadd.f32 %v591, %v817
    %v864 = vadd.f32 %v592, %v819
    %v865 = vadd.f32 %v593, %v821
    %v866 = vadd.f32 %v594, %v823
    %v867 = vadd.f32 %v595, %v825
    %v868 = vadd.f32 %v596, %v827
    %v869 = vadd.f32 %v597, %v829
    %v870 = vadd.f32 %v598, %v831
    %v871 = vadd.f32 %v599, %v833
    %v872 = vadd.f32 %v600, %v835
    %v873 = vadd.f32 %v601, %v837
    %v874 = vadd.f32 %v602, %v839
    %v875 = vadd.f32 %v603, %v841
    %v876 = vadd.f32 %v604, %v843
    %v877 = vadd.f32 %v605, %v845
    %v878 = vmul.f32 %v606, 0.5
    %v879 = vmul.f32 %v607, 0.5
    %v880 = vmul.f32 %v608, 0.5
    %v881 = vmul.f32 %v609, 0.5
    %v882 = vmul.f32 %v610, 0.5
    %v883 = vmul.f32 %v611, 0.5
    %v884 = vmul.f32 %v612, 0.5
    %v885 = vmul.f32 %v613, 0.5
    %v886 = vmul.f32 %v614, 0.5
    %v887 = vmul.f32 %v615, 0.5
    %v888 = vmul.f32 %v616, 0.5
    %v889 = vmul.f32 %v617, 0.5
    %v890 = vmul.f32 %v618, 0.5
    %v891 = vmul.f32 %v619, 0.5
    %v892 = vmul.f32 %v620, 0.5
    %v893 = vmul.f32 %v621, 0.5
    %910 = vrot.lane.b32.xlu0 %v878, 127
    %v911 = vpop.permute.xlu0 %910
    %912 = vrot.lane.b32.xlu0 %v879, 127
    %v913 = vpop.permute.xlu0 %912
    %914 = vrot.lane.b32.xlu0 %v880, 127
    %v915 = vpop.permute.xlu0 %914
    %916 = vrot.lane.b32.xlu0 %v881, 127
    %v917 = vpop.permute.xlu0 %916
    %918 = vrot.lane.b32.xlu0 %v882, 127
    %v919 = vpop.permute.xlu0 %918
    %920 = vrot.lane.b32.xlu0 %v883, 127
    %v921 = vpop.permute.xlu0 %920
    %922 = vrot.lane.b32.xlu0 %v884, 127
    %v923 = vpop.permute.xlu0 %922
    %924 = vrot.lane.b32.xlu0 %v885, 127
    %v925 = vpop.permute.xlu0 %924
    %926 = vrot.lane.b32.xlu0 %v886, 127
    %v927 = vpop.permute.xlu0 %926
    %928 = vrot.lane.b32.xlu0 %v887, 127
    %v929 = vpop.permute.xlu0 %928
    %930 = vrot.lane.b32.xlu0 %v888, 127
    %v931 = vpop.permute.xlu0 %930
    %932 = vrot.lane.b32.xlu0 %v889, 127
    %v933 = vpop.permute.xlu0 %932
    %934 = vrot.lane.b32.xlu0 %v890, 127
    %v935 = vpop.permute.xlu0 %934
    %936 = vrot.lane.b32.xlu0 %v891, 127
    %v937 = vpop.permute.xlu0 %936
    %938 = vrot.lane.b32.xlu0 %v892, 127
    %v939 = vpop.permute.xlu0 %938
    %940 = vrot.lane.b32.xlu0 %v893, 127
    %v941 = vpop.permute.xlu0 %940
    %v958 = vadd.f32 %v862, %v911
    %v959 = vadd.f32 %v863, %v913
    %v960 = vadd.f32 %v864, %v915
    %v961 = vadd.f32 %v865, %v917
    %v962 = vadd.f32 %v866, %v919
    %v963 = vadd.f32 %v867, %v921
    %v964 = vadd.f32 %v868, %v923
    %v965 = vadd.f32 %v869, %v925
    %v966 = vadd.f32 %v870, %v927
    %v967 = vadd.f32 %v871, %v929
    %v968 = vadd.f32 %v872, %v931
    %v969 = vadd.f32 %v873, %v933
    %v970 = vadd.f32 %v874, %v935
    %v971 = vadd.f32 %v875, %v937
    %v972 = vadd.f32 %v876, %v939
    %v973 = vadd.f32 %v877, %v941
    %vm974 = vcmask 130048
    %975 = vst.msk [vmem:[#allocation6] sm:$0xff] %vm974, %v958
    %976 = vst.msk [vmem:[#allocation6 + $0x8] sm:$0xff] %vm974, %v959
    %977 = vst.msk [vmem:[#allocation6 + $0x10] sm:$0xff] %vm974, %v960
    %978 = vst.msk [vmem:[#allocation6 + $0x18] sm:$0xff] %vm974, %v961
    %979 = vst.msk [vmem:[#allocation6 + $0x20] sm:$0xff] %vm974, %v962
    %980 = vst.msk [vmem:[#allocation6 + $0x28] sm:$0xff] %vm974, %v963
    %981 = vst.msk [vmem:[#allocation6 + $0x30] sm:$0xff] %vm974, %v964
    %982 = vst.msk [vmem:[#allocation6 + $0x38] sm:$0xff] %vm974, %v965
    %983 = vst.msk [vmem:[#allocation6 + $0x40] sm:$0xff] %vm974, %v966
    %984 = vst.msk [vmem:[#allocation6 + $0x48] sm:$0xff] %vm974, %v967
    %985 = vst.msk [vmem:[#allocation6 + $0x50] sm:$0xff] %vm974, %v968
    %986 = vst.msk [vmem:[#allocation6 + $0x58] sm:$0xff] %vm974, %v969
    %987 = vst.msk [vmem:[#allocation6 + $0x60] sm:$0xff] %vm974, %v970
    %988 = vst.msk [vmem:[#allocation6 + $0x68] sm:$0xff] %vm974, %v971
    %989 = vst.msk [vmem:[#allocation6 + $0x70] sm:$0xff] %vm974, %v972
    %990 = vst.msk [vmem:[#allocation6 + $0x78] sm:$0xff] %vm974, %v973
    // Predicated region
    $region10: #{tpu_custom_call.1} parent=1 // pred_check
      _
    $region11: #{tpu_custom_call.1} parent=1 // pred_check_branch
      %992 = sbr.rel (0) target = $region13
    $region12: #{tpu_custom_call.1} parent=1 // pred_region
      %s994 = ssub.s32 2048, 2048
      %995 = vsyncadd [#allocation5], %s994
      %s996 = sshll.u32 [#allocation6], 4
      %s997 = int_to_ptr.vmem [resolvable:$true] %s996
      %1002 = dma.vmem_to_hbm [thread:$0]  %s997, 2048, %s1, [#allocation5], 128, 128, 8
    $region13: #{tpu_custom_call.1} parent=1 // pred_fallthru
      _
    // Predicated region
    $region14: #{tpu_custom_call.1} parent=1 // pred_check
      _
    $region15: #{tpu_custom_call.1} parent=1 // pred_check_branch
      %1004 = sbr.rel (0) target = $region17
    $region16: #{tpu_custom_call.1} parent=1 // pred_region
      %1005 = dma.done [#allocation5], 2048
    $region17: #{tpu_custom_call.1} parent=1 // pred_fallthru
      _
    %1006 = vsyncpa [#allocation4], 1
    %1007 = vsyncpa [#allocation5], 1

</llo_original>
